<compile_context>
chip_gen: v7x
topology: tpu7x:2x2x1
jax: 0.10.0
libtpu: 0.0.40
codegen_flags: <defaults>
</compile_context>

<pallas_src>
import math

import jax
import jax.numpy as jnp
from jax.experimental import pallas as pl
from jax.experimental.pallas import tpu as pltpu


def _det3x3_kernel(x_ref, o_ref):
    # x_ref: (9, tile_n) channel-major block; o_ref: (1, tile_n).
    # Rows of the 3x3 matrix are consecutive channel triples:
    #   F = [[a, b, c], [d, e, f], [g, h, i]]
    def row(r):
        return x_ref[r:r + 1, :].astype(jnp.float32)   # (1, tile_n)

    a, b, c = row(0), row(1), row(2)
    d, e, f = row(3), row(4), row(5)
    g, h, i = row(6), row(7), row(8)

    det = (a * (e * i - f * h)
           - b * (d * i - f * g)
           + c * (d * h - e * g))
    o_ref[...] = det.astype(o_ref.dtype)


def mean_determinant(x, tile_n=32768):
    """Pallas implementation of det(stack(x[...,0:3], x[...,3:6], x[...,6:9]))[..., None]."""
    *lead, ch = x.shape
    assert ch >= 9, "last dim must carry at least 9 channels (row-major 3x3)"
    n = math.prod(lead) if lead else 1

    x9 = x[..., :9] if ch > 9 else x
    # Single glue transpose to channel-major, lane-dense layout.
    xt = jnp.transpose(jnp.reshape(x9, (n, 9)))           # (9, n)

    # Lane tile: multiple of 128, as large as useful to amortize the ~0.35 us
    # per-grid-step overhead; clamped so tiny inputs get one right-sized block.
    tile = min(tile_n, ((n + 127) // 128) * 128)
    grid = (pl.cdiv(n, tile),)

    out = pl.pallas_call(
        _det3x3_kernel,
        out_shape=jax.ShapeDtypeStruct((1, n), x.dtype),
        grid_spec=pltpu.PrefetchScalarGridSpec(
            num_scalar_prefetch=0,
            grid=grid,
            in_specs=[pl.BlockSpec((9, tile), lambda i: (0, i))],
            out_specs=pl.BlockSpec((1, tile), lambda i: (0, i)),
        ),
        compiler_params=pltpu.CompilerParams(
            dimension_semantics=("parallel",),      # lets v7x use both TCs
            vmem_limit_bytes=32 * 1024 * 1024,      # explicit cap, ample headroom
        ),
    )(xt)

    # (1, n) -> (*lead, 1) is a layout-free reshape (no transpose needed).
    return jnp.reshape(out, (*lead, 1))


if __name__ == "__main__":
    key = jax.random.PRNGKey(0)
    # Motion-track field: (B, H, W, 9) -> one row-major 3x3 matrix per pixel.
    x = jax.random.normal(key, (2, 16, 16, 9), dtype=jnp.float32)

    y = jax.block_until_ready(mean_determinant(x))

    # Reference: exact PyTorch semantics.
    F = jnp.stack((x[..., 0:3], x[..., 3:6], x[..., 6:9]), axis=-2)
    y_ref = jnp.linalg.det(F)[..., None]

    assert y.shape == (2, 16, 16, 1), y.shape
    assert jnp.allclose(y, y_ref, atol=1e-4, rtol=1e-4), float(
        jnp.max(jnp.abs(y - y_ref)))

    print("KERNEL_OK")
</pallas_src>

<mosaic_0001>
module attributes {stable_mosaic.version = 11 : i64} {
  func.func @_det3x3_kernel(%arg0: i32, %arg1: memref<9x512xf32, #tpu.memory_space<vmem>>, %arg2: memref<1x512xf32, #tpu.memory_space<vmem>>) attributes {dimension_semantics = [#tpu.dimension_semantics<parallel>], iteration_bounds = array<i64: 1>, scalar_prefetch = 0 : i64, scratch_operands = 0 : i64, tpu.core_type = #tpu.core_type<tc>, window_params = [{transform_indices = @transform_0, window_bounds = array<i64: 9, 512>}, {transform_indices = @transform_1, window_bounds = array<i64: 1, 512>}]} {
    %c0 = arith.constant 0 : index
    %c0_0 = arith.constant 0 : index
    %0 = vector.load %arg1[%c0, %c0_0] : memref<9x512xf32, #tpu.memory_space<vmem>>, vector<1x512xf32>
    %c1 = arith.constant 1 : index
    %c0_1 = arith.constant 0 : index
    %1 = vector.load %arg1[%c1, %c0_1] : memref<9x512xf32, #tpu.memory_space<vmem>>, vector<1x512xf32>
    %c2 = arith.constant 2 : index
    %c0_2 = arith.constant 0 : index
    %2 = vector.load %arg1[%c2, %c0_2] : memref<9x512xf32, #tpu.memory_space<vmem>>, vector<1x512xf32>
    %c3 = arith.constant 3 : index
    %c0_3 = arith.constant 0 : index
    %3 = vector.load %arg1[%c3, %c0_3] : memref<9x512xf32, #tpu.memory_space<vmem>>, vector<1x512xf32>
    %c4 = arith.constant 4 : index
    %c0_4 = arith.constant 0 : index
    %4 = vector.load %arg1[%c4, %c0_4] : memref<9x512xf32, #tpu.memory_space<vmem>>, vector<1x512xf32>
    %c5 = arith.constant 5 : index
    %c0_5 = arith.constant 0 : index
    %5 = vector.load %arg1[%c5, %c0_5] : memref<9x512xf32, #tpu.memory_space<vmem>>, vector<1x512xf32>
    %c6 = arith.constant 6 : index
    %c0_6 = arith.constant 0 : index
    %6 = vector.load %arg1[%c6, %c0_6] : memref<9x512xf32, #tpu.memory_space<vmem>>, vector<1x512xf32>
    %c7 = arith.constant 7 : index
    %c0_7 = arith.constant 0 : index
    %7 = vector.load %arg1[%c7, %c0_7] : memref<9x512xf32, #tpu.memory_space<vmem>>, vector<1x512xf32>
    %c8 = arith.constant 8 : index
    %c0_8 = arith.constant 0 : index
    %8 = vector.load %arg1[%c8, %c0_8] : memref<9x512xf32, #tpu.memory_space<vmem>>, vector<1x512xf32>
    %9 = arith.mulf %4, %8 : vector<1x512xf32>
    %10 = arith.mulf %5, %7 : vector<1x512xf32>
    %11 = arith.subf %9, %10 : vector<1x512xf32>
    %12 = arith.mulf %0, %11 : vector<1x512xf32>
    %13 = arith.mulf %3, %8 : vector<1x512xf32>
    %14 = arith.mulf %5, %6 : vector<1x512xf32>
    %15 = arith.subf %13, %14 : vector<1x512xf32>
    %16 = arith.mulf %1, %15 : vector<1x512xf32>
    %17 = arith.subf %12, %16 : vector<1x512xf32>
    %18 = arith.mulf %3, %7 : vector<1x512xf32>
    %19 = arith.mulf %4, %6 : vector<1x512xf32>
    %20 = arith.subf %18, %19 : vector<1x512xf32>
    %21 = arith.mulf %2, %20 : vector<1x512xf32>
    %22 = arith.addf %17, %21 : vector<1x512xf32>
    %c0_9 = arith.constant 0 : index
    %c0_10 = arith.constant 0 : index
    %23 = vector.load %arg2[%c0_9, %c0_10] : memref<1x512xf32, #tpu.memory_space<vmem>>, vector<1x512xf32>
    tpu.vector_store %arg2[%c0_9, %c0_10], %22 {strides = array<i32>} : memref<1x512xf32, #tpu.memory_space<vmem>>, vector<1x512xf32>,
    return
  }
  func.func @transform_0(%arg0: i32) -> (i32, i32) {
    %c0_i32 = arith.constant 0 : i32
    %c0_i32_0 = arith.constant 0 : i32
    return %c0_i32, %arg0 : i32, i32
  }
  func.func @transform_1(%arg0: i32) -> (i32, i32) {
    %c0_i32 = arith.constant 0 : i32
    %c0_i32_0 = arith.constant 0 : i32
    return %c0_i32, %arg0 : i32, i32
  }
}

</mosaic_0001>

<llo_original>
// kernel: tpu_custom_call.1
$region0: #{tpu_custom_call.1}
  #allocation0 [shape = 'u32[]', space=smem, size = 0x4, offset = 0x4, fixed_abs, tag = 'smem constant byte address 0x4 - core index']
  #allocation1 [shape = 'u32[144,128]{1,0:T(1,128)}', space=vmem, size = 0x12000, scoped, tag = 'internal scratch']
  %s0 = inlined_call_operand.hbm [shape: f32[9,512], index: 0, kind: input, shape index: {}]
  %s1 = inlined_call_operand.hbm [shape: f32[1,512], index: 1, kind: output, shape index: {}]
  %s2 = sld [smem:[#allocation0]]
  $region18: #{tpu_custom_call.1} parent=0
    _
  %s4 = ssub.s32 1, %s2
  %s5 = scalar_select 0, %s4, %s2
  $region1: #{tpu_custom_call.1} parent=0
    #allocation2 [shape = 'u8[32768]{0}', space=vmem, size = 0x8000, scoped, tag = 'input window, operand 0, single buffered']
    #allocation3 [shape = 's32[1]{0}', space=sflag, size = 0x4, scoped, tag = 'scoped memory for tpu_custom_call.1']
    #allocation4 [shape = 's32[1]{0}', space=sflag, size = 0x4, scoped, tag = 'scoped memory for tpu_custom_call.1']
    #allocation5 [shape = 'u8[2048]{0}', space=vmem, size = 0x800, scoped, tag = 'output window, operand 0, single buffered']
    %6 = vsyncpa [#allocation3], 0
    %7 = vsyncpa [#allocation4], 0
    // Predicated region
    $region2: #{tpu_custom_call.1} parent=1 // pred_check
      _
    $region3: #{tpu_custom_call.1} parent=1 // pred_check_branch
      %9 = sbr.rel (0) target = $region5
    $region4: #{tpu_custom_call.1} parent=1 // pred_region
      %s11 = ssub.s32 1024, 1024
      %12 = vsyncadd [#allocation3], %s11
      %s13 = sshll.u32 [#allocation2], 4
      %s14 = int_to_ptr.vmem [resolvable:$true] %s13
      %19 = dma.hbm_to_vmem [thread:$0]  %s0, 1024, %s14, [#allocation3], 512, 512, 32
    $region5: #{tpu_custom_call.1} parent=1 // pred_fallthru
      _
    // Predicated region
    $region6: #{tpu_custom_call.1} parent=1 // pred_check
      _
    $region7: #{tpu_custom_call.1} parent=1 // pred_check_branch
      %21 = sbr.rel (0) target = $region9
    $region8: #{tpu_custom_call.1} parent=1 // pred_region
      %22 = dma.done [#allocation3], 1024
    $region9: #{tpu_custom_call.1} parent=1 // pred_fallthru
      _
    %v23 = vld [vmem:[#allocation2] ss:$8 sm:$0xf]
    %s24 = scalar_lea.vmem [#allocation2], 1
    %v25 = vld [vmem:[%s24] ss:$8 sm:$0xf]
    %s26 = scalar_lea.vmem [#allocation2], 2
    %v27 = vld [vmem:[%s26] ss:$8 sm:$0xf]
    %s28 = scalar_lea.vmem [#allocation2], 3
    %v29 = vld [vmem:[%s28] ss:$8 sm:$0xf]
    %s30 = scalar_lea.vmem [#allocation2], 4
    %v31 = vld [vmem:[%s30] ss:$8 sm:$0xf]
    %s32 = scalar_lea.vmem [#allocation2], 5
    %v33 = vld [vmem:[%s32] ss:$8 sm:$0xf]
    %s34 = scalar_lea.vmem [#allocation2], 6
    %v35 = vld [vmem:[%s34] ss:$8 sm:$0xf]
    %s36 = scalar_lea.vmem [#allocation2], 7
    %v37 = vld [vmem:[%s36] ss:$8 sm:$0xf]
    %s38 = scalar_lea.vmem [#allocation2], 32
    %v39 = vld [vmem:[%s38] ss:$8 sm:$0xf]
    %v40 = vmul.f32 %v31, %v39
    %v41 = vmul.f32 %v33, %v37
    %v42 = vsub.f32 %v40, %v41
    %v43 = vmul.f32 %v23, %v42
    %v44 = vmul.f32 %v29, %v39
    %v45 = vmul.f32 %v33, %v35
    %v46 = vsub.f32 %v44, %v45
    %v47 = vmul.f32 %v25, %v46
    %v48 = vsub.f32 %v43, %v47
    %v49 = vmul.f32 %v29, %v37
    %v50 = vmul.f32 %v31, %v35
    %v51 = vsub.f32 %v49, %v50
    %v52 = vmul.f32 %v27, %v51
    %v53 = vadd.f32 %v48, %v52
    %v54 = vlaneseq
    %vm55 = vcmp.ge.s32.totalorder %v54, 0
    %vm56 = vcmp.lt.s32.totalorder %v54, 512
    %vm57 = vmand %vm55, %vm56
    %58 = vst.msk [vmem:[#allocation5] sm:$0xf] %vm57, %v53
    // Predicated region
    $region10: #{tpu_custom_call.1} parent=1 // pred_check
      _
    $region11: #{tpu_custom_call.1} parent=1 // pred_check_branch
      %60 = sbr.rel (0) target = $region13
    $region12: #{tpu_custom_call.1} parent=1 // pred_region
      %s62 = ssub.s32 64, 64
      %63 = vsyncadd [#allocation4], %s62
      %s65 = sshll.u32 [#allocation5], 4
      %s66 = int_to_ptr.vmem [resolvable:$true] %s65
      %68 = dma.vmem_to_hbm [thread:$0]  %s66, 64, %s1, [#allocation4]
    $region13: #{tpu_custom_call.1} parent=1 // pred_fallthru
      _
    // Predicated region
    $region14: #{tpu_custom_call.1} parent=1 // pred_check
      _
    $region15: #{tpu_custom_call.1} parent=1 // pred_check_branch
      %70 = sbr.rel (0) target = $region17
    $region16: #{tpu_custom_call.1} parent=1 // pred_region
      %71 = dma.done [#allocation4], 64
    $region17: #{tpu_custom_call.1} parent=1 // pred_fallthru
      _
    %72 = vsyncpa [#allocation3], 1
    %73 = vsyncpa [#allocation4], 1

</llo_original>
